<compile_context>
chip_gen: v6e
topology: v6e:2x2x1
jax: 0.10.0
libtpu: 0.0.40
codegen_flags: <defaults>
</compile_context>

<pallas_src>
import functools
import math

import jax
import jax.numpy as jnp
from jax.experimental import pallas as pl
from jax.experimental.pallas import tpu as pltpu


def _round_up(v: int, m: int) -> int:
    return (v + m - 1) // m * m


def make_positional_encoding_table(d_model: int, max_len: int = 5000,
                                   dtype=jnp.float32) -> jnp.ndarray:
    """Sinusoidal table identical to the PyTorch __init__, stored 2-D (max_len, D).

    Pre-cast to the activation dtype so no per-call slice/cast is needed.
    (The PyTorch buffer is (max_len, 1, D); the size-1 batch dim is broadcast
    in-kernel instead, avoiding 8x sublane padding of pe VMEM tiles.)
    """
    position = jnp.arange(0, max_len, dtype=jnp.float32)[:, None]           # (max_len, 1)
    div_term = jnp.exp(
        jnp.arange(0, d_model, 2, dtype=jnp.float32) * (-math.log(10000.0) / d_model)
    )
    pe = jnp.zeros((max_len, d_model), dtype=jnp.float32)
    pe = pe.at[:, 0::2].set(jnp.sin(position * div_term))
    pe = pe.at[:, 1::2].set(jnp.cos(position * div_term[: d_model // 2]))
    return pe.astype(dtype)


def _add_pe_kernel_3d(x_ref, pe_ref, o_ref):
    # x_ref: (ts, B, D); pe_ref: (ts, D) -> broadcast over the batch axis.
    o_ref[...] = (x_ref[...] + pe_ref[...][:, None, :]).astype(o_ref.dtype)


def _add_pe_kernel_flat(x_ref, pe_ref, o_ref, *, reps):
    # x_ref: (ts, B*D); pe_ref: (ts, D). Column b*D + d of x pairs with pe[:, d],
    # so replicate pe across the B lane groups.
    pe = pe_ref[...]
    if reps > 1:
        pe = jnp.tile(pe, (1, reps))
    o_ref[...] = (x_ref[...] + pe).astype(o_ref.dtype)


def positional_encoding_forward(x: jnp.ndarray, pe: jnp.ndarray) -> jnp.ndarray:
    """x: (S, B, D); pe: (max_len, D), pre-cast to x.dtype. Returns x + pe[:S, None, :]."""
    S, B, D = x.shape
    max_len = pe.shape[0]
    assert pe.shape == (max_len, D) and max_len >= S

    if pe.dtype != x.dtype:
        # Fallback only; preferably pre-cast at init (see make_positional_encoding_table).
        pe = pe.astype(x.dtype)

    itemsize = jnp.dtype(x.dtype).itemsize

    # ---- chip-aware budgets -------------------------------------------------
    try:
        vmem_cap = int(pltpu.get_tpu_info().vmem_capacity_bytes)
    except Exception:
        vmem_cap = 64 * 1024 * 1024  # conservative (v7x-sized) fallback
    if vmem_cap <= 64 * 1024 * 1024:          # v7x: 64 MiB/TC, 2 TCs share the grid
        vmem_limit = 48 * 1024 * 1024
        target_tile_bytes = 4 * 1024 * 1024   # padded x-tile target
        min_grid_steps = 8                    # ~4 steps per core -> real pipelining
    else:                                      # v5e / v6e: 128 MiB VMEM, 1 TC
        vmem_limit = 64 * 1024 * 1024
        target_tile_bytes = 8 * 1024 * 1024
        min_grid_steps = 1                    # biggest tile that fits wins

    # ---- layout selection ----------------------------------------------------
    # Lane-dense path: flatten (B, D) -> B*D when that stays a multiple of 128.
    # Avoids masked partial stores for D < 128 and 8/B sublane waste for B < 8.
    use_flat = (B * D) % 128 == 0 and (B < 8 or D % 128 != 0)

    if use_flat:
        x_pos_padded = B * D * itemsize                            # lanes already dense
    else:
        x_pos_padded = _round_up(B, 8) * _round_up(D, 128) * itemsize
    pe_pos_padded = _round_up(D, 128) * itemsize

    # ---- tile sizing with PADDED bytes (double-buffered x, out, pe) ----------
    tile_budget = (vmem_limit * 3) // 4
    per_pos_total = 2 * (2 * x_pos_padded + pe_pos_padded)
    ts = max(1, target_tile_bytes // max(1, x_pos_padded))
    ts = min(ts, max(1, tile_budget // max(1, per_pos_total)))
    ts = min(ts, max(1, pl.cdiv(S, min_grid_steps)))
    if ts >= S:
        ts = S
    else:
        ts = min(S, max(8, (ts // 8) * 8))   # ts sits on a sublane axis -> multiple of 8
    if ts == S and S % 8 != 0:
        # Block first-dim must be a multiple of 8 or equal the full array extent;
        # slice pe to exactly S rows in this irregular case (tiny copy).
        pe = pe[:S]

    grid = (pl.cdiv(S, ts),)

    cost = pl.CostEstimate(
        flops=S * B * D,
        transcendentals=0,
        bytes_accessed=(2 * S * B * D + S * D) * itemsize,  # x read + out write + pe read
    )
    cparams = pltpu.CompilerParams(
        dimension_semantics=("parallel",),
        vmem_limit_bytes=vmem_limit,
    )

    if use_flat:
        x2 = x.reshape(S, B * D)  # contiguous trailing-dim merge: free
        out2 = pl.pallas_call(
            functools.partial(_add_pe_kernel_flat, reps=B),
            out_shape=jax.ShapeDtypeStruct((S, B * D), x.dtype),
            grid_spec=pltpu.PrefetchScalarGridSpec(
                num_scalar_prefetch=0,
                grid=grid,
                in_specs=[
                    pl.BlockSpec((ts, B * D), lambda s: (s, 0)),
                    pl.BlockSpec((ts, D), lambda s: (s, 0)),
                ],
                out_specs=pl.BlockSpec((ts, B * D), lambda s: (s, 0)),
            ),
            compiler_params=cparams,
            cost_estimate=cost,
        )(x2, pe)
        return out2.reshape(S, B, D)

    return pl.pallas_call(
        _add_pe_kernel_3d,
        out_shape=jax.ShapeDtypeStruct((S, B, D), x.dtype),
        grid_spec=pltpu.PrefetchScalarGridSpec(
            num_scalar_prefetch=0,
            grid=grid,
            in_specs=[
                pl.BlockSpec((ts, B, D), lambda s: (s, 0, 0)),
                pl.BlockSpec((ts, D), lambda s: (s, 0)),
            ],
            out_specs=pl.BlockSpec((ts, B, D), lambda s: (s, 0, 0)),
        ),
        compiler_params=cparams,
        cost_estimate=cost,
    )(x, pe)


if __name__ == "__main__":
    # Small shapes consistent with the module: seq=8, batch=2, d_model=32
    S, B, D = 8, 2, 32
    max_len = 64

    key = jax.random.PRNGKey(0)
    x = jax.random.normal(key, (S, B, D), dtype=jnp.float32)

    pe = make_positional_encoding_table(D, max_len, dtype=x.dtype)  # (max_len, D)

    out = positional_encoding_forward(x, pe)
    out = jax.block_until_ready(out)

    # reference check against plain JAX broadcast add (pe[:S] broadcast over batch)
    ref = x + pe[:S][:, None, :]
    assert out.shape == (S, B, D)
    assert jnp.allclose(out, ref, atol=1e-6), "mismatch vs reference"

    print("KERNEL_OK")
</pallas_src>

<mosaic_0001>
module attributes {stable_mosaic.version = 11 : i64} {
  func.func @_add_pe_kernel_3d(%arg0: i32, %arg1: memref<8x2x32xf32, #tpu.memory_space<vmem>>, %arg2: memref<8x32xf32, #tpu.memory_space<vmem>>, %arg3: memref<8x2x32xf32, #tpu.memory_space<vmem>>) attributes {dimension_semantics = [#tpu.dimension_semantics<parallel>], iteration_bounds = array<i64: 1>, scalar_prefetch = 0 : i64, scratch_operands = 0 : i64, tpu.core_type = #tpu.core_type<tc>, window_params = [{transform_indices = @transform_0, window_bounds = array<i64: 8, 2, 32>}, {transform_indices = @transform_1, window_bounds = array<i64: 8, 32>}, {transform_indices = @transform_2, window_bounds = array<i64: 8, 2, 32>}]} {
    %c0 = arith.constant 0 : index
    %c0_0 = arith.constant 0 : index
    %c0_1 = arith.constant 0 : index
    %0 = vector.load %arg1[%c0, %c0_0, %c0_1] : memref<8x2x32xf32, #tpu.memory_space<vmem>>, vector<8x2x32xf32>
    %c0_2 = arith.constant 0 : index
    %c0_3 = arith.constant 0 : index
    %1 = vector.load %arg2[%c0_2, %c0_3] : memref<8x32xf32, #tpu.memory_space<vmem>>, vector<8x32xf32>
    %2 = vector.shape_cast %1 : vector<8x32xf32> to vector<8x1x32xf32>
    %3 = vector.broadcast %2 : vector<8x1x32xf32> to vector<8x2x32xf32>
    %4 = arith.addf %0, %3 : vector<8x2x32xf32>
    %c0_4 = arith.constant 0 : index
    %c0_5 = arith.constant 0 : index
    %c0_6 = arith.constant 0 : index
    %5 = vector.load %arg3[%c0_4, %c0_5, %c0_6] : memref<8x2x32xf32, #tpu.memory_space<vmem>>, vector<8x2x32xf32>
    tpu.vector_store %arg3[%c0_4, %c0_5, %c0_6], %4 {strides = array<i32>} : memref<8x2x32xf32, #tpu.memory_space<vmem>>, vector<8x2x32xf32>,
    return
  }
  func.func @transform_0(%arg0: i32) -> (i32, i32, i32) {
    %c0_i32 = arith.constant 0 : i32
    %c0_i32_0 = arith.constant 0 : i32
    %c0_i32_1 = arith.constant 0 : i32
    return %arg0, %c0_i32, %c0_i32_0 : i32, i32, i32
  }
  func.func @transform_1(%arg0: i32) -> (i32, i32) {
    %c0_i32 = arith.constant 0 : i32
    %c0_i32_0 = arith.constant 0 : i32
    return %arg0, %c0_i32 : i32, i32
  }
  func.func @transform_2(%arg0: i32) -> (i32, i32, i32) {
    %c0_i32 = arith.constant 0 : i32
    %c0_i32_0 = arith.constant 0 : i32
    %c0_i32_1 = arith.constant 0 : i32
    return %arg0, %c0_i32, %c0_i32_0 : i32, i32, i32
  }
}

</mosaic_0001>

<llo_original>
// kernel: tpu_custom_call.1
$region0: #{tpu_custom_call.1}
  #allocation0 [shape = 'u32[]', space=smem, size = 0x4, offset = 0x4, fixed_abs, tag = 'smem constant byte address 0x4 - core index']
  #allocation1 [shape = 'u32[144,128]{1,0:T(1,128)}', space=vmem, size = 0x12000, scoped, tag = 'internal scratch']
  %s0 = inlined_call_operand.vmem [shape: f32[8,2,32], index: 0, kind: input, shape index: {}]
  %s1 = inlined_call_operand.vmem [shape: f32[64,32], index: 1, kind: input, shape index: {}]
  %s2 = inlined_call_operand.hbm [shape: f32[8,2,32], index: 2, kind: output, shape index: {}]
  %s3 = sld [smem:[#allocation0]]
  $region18: #{tpu_custom_call.1} parent=0
    _
  %s5 = ssub.s32 1, %s3
  %s6 = scalar_select 0, %s5, %s3
  $region1: #{tpu_custom_call.1} parent=0
    #allocation2 [shape = 'u8[8192]{0}', space=vmem, size = 0x2000, scoped, tag = 'output window, operand 0, single buffered']
    #allocation3 [shape = 's32[1]{0}', space=sflag, size = 0x4, scoped, tag = 'scoped memory for tpu_custom_call.1']
    %7 = vsyncpa [#allocation3], 0
    // Predicated region
    $region2: #{tpu_custom_call.1} parent=1 // pred_check
      _
    $region3: #{tpu_custom_call.1} parent=1 // pred_check_branch
      %9 = sbr.rel (0) target = $region5
    $region4: #{tpu_custom_call.1} parent=1 // pred_region
      _
    $region5: #{tpu_custom_call.1} parent=1 // pred_fallthru
      _
    // Predicated region
    $region6: #{tpu_custom_call.1} parent=1 // pred_check
      _
    $region7: #{tpu_custom_call.1} parent=1 // pred_check_branch
      %11 = sbr.rel (0) target = $region9
    $region8: #{tpu_custom_call.1} parent=1 // pred_region
      _
    $region9: #{tpu_custom_call.1} parent=1 // pred_fallthru
      _
    %v12 = vld [vmem:[%s0] sm:$0x3]
    %v13 = vld [vmem:[%s0 + $0x2] sm:$0x3]
    %v14 = vld [vmem:[%s0 + $0x4] sm:$0x3]
    %v15 = vld [vmem:[%s0 + $0x6] sm:$0x3]
    %v16 = vld [vmem:[%s0 + $0x8] sm:$0x3]
    %v17 = vld [vmem:[%s0 + $0xa] sm:$0x3]
    %v18 = vld [vmem:[%s0 + $0xc] sm:$0x3]
    %v19 = vld [vmem:[%s0 + $0xe] sm:$0x3]
    %v20 = vld [vmem:[%s1] sm:$0xff]
    %v22 = vcombine.high %v20, %v20
    %v24 = vunpack.c.l.s4 1966171168
    %v25 = vunpack.c.0.s8 %v24
    %v26 = vlaneseq
    %v27 = vshrl.u32 %v26, 7
    %v28 = vsub.s32 %v25, %v27
    %v29 = vrot.slane %v20, %v28
    %v31 = vunpack.c.l.s4 1966171168
    %v32 = vunpack.c.0.s8 %v31
    %v33 = vlaneseq
    %v34 = vshrl.u32 %v33, 7
    %v35 = vsub.s32 %v32, %v34
    %v36 = vrot.slane %v22, %v35
    %v37 = vcombine.high %v29, %v29
    %v38 = vcombine.high %v36, %v36
    %v40 = vunpack.c.l.s4 1966171168
    %v41 = vunpack.c.0.s8 %v40
    %v42 = vlaneseq
    %v43 = vshrl.u32 %v42, 7
    %v44 = vsub.s32 %v41, %v43
    %v45 = vrot.slane %v29, %v44
    %v47 = vunpack.c.l.s4 1966171168
    %v48 = vunpack.c.0.s8 %v47
    %v49 = vlaneseq
    %v50 = vshrl.u32 %v49, 7
    %v51 = vsub.s32 %v48, %v50
    %v52 = vrot.slane %v36, %v51
    %v54 = vunpack.c.l.s4 1966171168
    %v55 = vunpack.c.0.s8 %v54
    %v56 = vlaneseq
    %v57 = vshrl.u32 %v56, 7
    %v58 = vsub.s32 %v55, %v57
    %v59 = vrot.slane %v37, %v58
    %v61 = vunpack.c.l.s4 1966171168
    %v62 = vunpack.c.0.s8 %v61
    %v63 = vlaneseq
    %v64 = vshrl.u32 %v63, 7
    %v65 = vsub.s32 %v62, %v64
    %v66 = vrot.slane %v38, %v65
    %v67 = vcombine.high %v45, %v45
    %v68 = vcombine.high %v52, %v52
    %v69 = vcombine.high %v59, %v59
    %v70 = vcombine.high %v66, %v66
    %v71 = vlaneseq
    %v72 = vshrl.u32 %v71, 7
    %v73 = vsub.s32 0, %v72
    %v74 = vrot.slane %v45, %v73
    %v75 = vlaneseq
    %v76 = vshrl.u32 %v75, 7
    %v77 = vsub.s32 0, %v76
    %v78 = vrot.slane %v59, %v77
    %v79 = vlaneseq
    %v80 = vshrl.u32 %v79, 7
    %v81 = vsub.s32 0, %v80
    %v82 = vrot.slane %v67, %v81
    %v83 = vlaneseq
    %v84 = vshrl.u32 %v83, 7
    %v85 = vsub.s32 0, %v84
    %v86 = vrot.slane %v69, %v85
    %v87 = vlaneseq
    %v88 = vshrl.u32 %v87, 7
    %v89 = vsub.s32 0, %v88
    %v90 = vrot.slane %v52, %v89
    %v91 = vlaneseq
    %v92 = vshrl.u32 %v91, 7
    %v93 = vsub.s32 0, %v92
    %v94 = vrot.slane %v66, %v93
    %v95 = vlaneseq
    %v96 = vshrl.u32 %v95, 7
    %v97 = vsub.s32 0, %v96
    %v98 = vrot.slane %v68, %v97
    %v99 = vlaneseq
    %v100 = vshrl.u32 %v99, 7
    %v101 = vsub.s32 0, %v100
    %v102 = vrot.slane %v70, %v101
    %v111 = vadd.f32 %v12, %v74
    %v112 = vadd.f32 %v13, %v78
    %v113 = vadd.f32 %v14, %v82
    %v114 = vadd.f32 %v15, %v86
    %v115 = vadd.f32 %v16, %v90
    %v116 = vadd.f32 %v17, %v94
    %v117 = vadd.f32 %v18, %v98
    %v118 = vadd.f32 %v19, %v102
    %vm119 = vcmask 254976
    %120 = vst.msk [vmem:[#allocation2] sm:$0x3] %vm119, %v111
    %121 = vst.msk [vmem:[#allocation2 + $0x2] sm:$0x3] %vm119, %v112
    %122 = vst.msk [vmem:[#allocation2 + $0x4] sm:$0x3] %vm119, %v113
    %123 = vst.msk [vmem:[#allocation2 + $0x6] sm:$0x3] %vm119, %v114
    %124 = vst.msk [vmem:[#allocation2 + $0x8] sm:$0x3] %vm119, %v115
    %125 = vst.msk [vmem:[#allocation2 + $0xa] sm:$0x3] %vm119, %v116
    %126 = vst.msk [vmem:[#allocation2 + $0xc] sm:$0x3] %vm119, %v117
    %127 = vst.msk [vmem:[#allocation2 + $0xe] sm:$0x3] %vm119, %v118
    // Predicated region
    $region10: #{tpu_custom_call.1} parent=1 // pred_check
      _
    $region11: #{tpu_custom_call.1} parent=1 // pred_check_branch
      %129 = sbr.rel (0) target = $region13
    $region12: #{tpu_custom_call.1} parent=1 // pred_region
      %s131 = ssub.s32 256, 256
      %132 = vsyncadd [#allocation3], %s131
      %s133 = sshll.u32 [#allocation2], 4
      %s134 = int_to_ptr.vmem [resolvable:$true] %s133
      %139 = dma.vmem_to_hbm [thread:$0]  %s134, 256, %s2, [#allocation3], 32, 32, 2
    $region13: #{tpu_custom_call.1} parent=1 // pred_fallthru
      _
    // Predicated region
    $region14: #{tpu_custom_call.1} parent=1 // pred_check
      _
    $region15: #{tpu_custom_call.1} parent=1 // pred_check_branch
      %141 = sbr.rel (0) target = $region17
    $region16: #{tpu_custom_call.1} parent=1 // pred_region
      %142 = dma.done [#allocation3], 256
    $region17: #{tpu_custom_call.1} parent=1 // pred_fallthru
      _
    %143 = vsyncpa [#allocation3], 1

</llo_original>
